<compile_context>
chip_gen: v7x
topology: tpu7x:2x2x1
jax: 0.10.0
libtpu: 0.0.40
codegen_flags: <defaults>
</compile_context>

<pallas_src>
import functools
import math

import jax
import jax.numpy as jnp
from jax.experimental import pallas as pl
from jax.experimental.pallas import tpu as pltpu

_LN_EPS = 1e-5
_MASK_FILL = -1e9
_MAX_TILE_ROWS = 512  # keeps double-buffered footprint well under v7x scoped VMEM


def _row_tile(rows: int) -> int:
    # Full array if it fits in one block, else 512-row blocks (multiple of 8);
    # ragged last block is masked by Pallas via pl.cdiv grid sizing.
    return rows if rows <= _MAX_TILE_ROWS else _MAX_TILE_ROWS


# --------------------------------------------------------------------------- #
# LayerNorm kernel                                                            #
# --------------------------------------------------------------------------- #
def _layernorm_kernel(x_ref, g_ref, b_ref, o_ref, *, eps):
    x = x_ref[...].astype(jnp.float32)                 # (tile_rows, D)
    mu = jnp.mean(x, axis=-1, keepdims=True)
    xc = x - mu
    var = jnp.mean(xc * xc, axis=-1, keepdims=True)
    inv = jax.lax.rsqrt(var + eps)
    y = xc * inv * g_ref[...] + b_ref[...]
    o_ref[...] = y.astype(o_ref.dtype)


def layernorm(x, gamma, beta, *, eps=_LN_EPS):
    rows, d = x.shape
    tr = _row_tile(rows)
    g2 = gamma.reshape(1, d)
    b2 = beta.reshape(1, d)
    cost = pl.CostEstimate(
        flops=8 * rows * d,
        transcendentals=rows,
        bytes_accessed=int(2 * x.nbytes + g2.nbytes + b2.nbytes),
    )
    return pl.pallas_call(
        functools.partial(_layernorm_kernel, eps=eps),
        out_shape=jax.ShapeDtypeStruct((rows, d), x.dtype),
        grid=(pl.cdiv(rows, tr),),
        in_specs=[
            pl.BlockSpec((tr, d), lambda i: (i, 0)),
            pl.BlockSpec((1, d), lambda i: (0, 0)),
            pl.BlockSpec((1, d), lambda i: (0, 0)),
        ],
        out_specs=pl.BlockSpec((tr, d), lambda i: (i, 0)),
        compiler_params=pltpu.CompilerParams(dimension_semantics=("parallel",)),
        cost_estimate=cost,
    )(x, g2, b2)


# --------------------------------------------------------------------------- #
# Linear kernel: y = act(x @ W + b) [+ residual]   (bias/act/residual fused)  #
# --------------------------------------------------------------------------- #
def _linear_kernel(*refs, activation, has_residual):
    if has_residual:
        x_ref, w_ref, b_ref, r_ref, o_ref = refs
    else:
        x_ref, w_ref, b_ref, o_ref = refs
    y = jnp.dot(x_ref[...], w_ref[...], preferred_element_type=jnp.float32)
    y = y + b_ref[...]
    if activation == "relu":
        y = jnp.maximum(y, 0.0)
    if has_residual:
        y = y + r_ref[...]
    o_ref[...] = y.astype(o_ref.dtype)


def linear(x, w, b, *, residual=None, activation=None):
    rows, k = x.shape
    m = w.shape[1]
    tr = _row_tile(rows)
    b2 = b.reshape(1, m)
    has_res = residual is not None

    in_specs = [
        pl.BlockSpec((tr, k), lambda i: (i, 0)),
        pl.BlockSpec((k, m), lambda i: (0, 0)),
        pl.BlockSpec((1, m), lambda i: (0, 0)),
    ]
    args = [x, w, b2]
    if has_res:
        in_specs.append(pl.BlockSpec((tr, m), lambda i: (i, 0)))
        args.append(residual)

    bytes_accessed = x.nbytes + w.nbytes + b2.nbytes + rows * m * x.dtype.itemsize
    if has_res:
        bytes_accessed += residual.nbytes
    cost = pl.CostEstimate(
        flops=2 * rows * k * m,
        transcendentals=0,
        bytes_accessed=int(bytes_accessed),
    )
    return pl.pallas_call(
        functools.partial(_linear_kernel, activation=activation,
                          has_residual=has_res),
        out_shape=jax.ShapeDtypeStruct((rows, m), x.dtype),
        grid=(pl.cdiv(rows, tr),),
        in_specs=in_specs,
        out_specs=pl.BlockSpec((tr, m), lambda i: (i, 0)),
        compiler_params=pltpu.CompilerParams(dimension_semantics=("parallel",)),
        cost_estimate=cost,
    )(*args)


# --------------------------------------------------------------------------- #
# Scaled-dot-product attention kernel (one batch*head tile per grid step)     #
# --------------------------------------------------------------------------- #
def _attention_kernel(q_ref, kt_ref, v_ref, m_ref, o_ref, *, scale):
    q = q_ref[0]                                       # (S, Dh)
    kt = kt_ref[0]                                     # (Dh, S) pre-transposed
    v = v_ref[0]                                       # (S, Dh)
    m = m_ref[0]                                       # (S, S)

    s = jnp.dot(q, kt, preferred_element_type=jnp.float32) * scale
    s = jnp.where(m != 0, s, _MASK_FILL)
    s = s - jnp.max(s, axis=-1, keepdims=True)
    p = jnp.exp(s)
    p = p / jnp.sum(p, axis=-1, keepdims=True)
    ctx = jnp.dot(p, v, preferred_element_type=jnp.float32)
    o_ref[0] = ctx.astype(o_ref.dtype)


def attention(q, kt, v, mask, *, num_heads, scale):
    bh, s, dh = q.shape
    cost = pl.CostEstimate(
        flops=4 * bh * s * s * dh,
        transcendentals=bh * s * s,
        bytes_accessed=int(q.nbytes + kt.nbytes + v.nbytes + mask.nbytes + q.nbytes),
    )
    return pl.pallas_call(
        functools.partial(_attention_kernel, scale=scale),
        out_shape=jax.ShapeDtypeStruct((bh, s, dh), q.dtype),
        grid=(bh,),
        in_specs=[
            pl.BlockSpec((1, s, dh), lambda i: (i, 0, 0)),
            pl.BlockSpec((1, dh, s), lambda i: (i, 0, 0)),
            pl.BlockSpec((1, s, dh), lambda i: (i, 0, 0)),
            pl.BlockSpec((1, s, s), lambda i: (i // num_heads, 0, 0)),
        ],
        out_specs=pl.BlockSpec((1, s, dh), lambda i: (i, 0, 0)),
        compiler_params=pltpu.CompilerParams(dimension_semantics=("parallel",)),
        cost_estimate=cost,
    )(q, kt, v, mask)


# --------------------------------------------------------------------------- #
# EncoderLayer forward                                                        #
# --------------------------------------------------------------------------- #
def encoder_layer(x, mask, params, *, num_heads, use_residual=True):
    """x: (B, S, D) float32; mask: (B, S, S) with nonzero = attend."""
    b, s, d = x.shape
    dh = d // num_heads
    xf = x.reshape(b * s, d)

    def to_heads(t):
        return (t.reshape(b, s, num_heads, dh)
                 .transpose(0, 2, 1, 3)
                 .reshape(b * num_heads, s, dh))

    def self_attn(h_flat, residual):
        qkv = linear(h_flat, params["w_qkv"], params["b_qkv"])        # (N, 3D)
        q, k, v = jnp.split(qkv, 3, axis=-1)
        qh, kh, vh = to_heads(q), to_heads(k), to_heads(v)
        kth = kh.transpose(0, 2, 1)          # (BH, Dh, S): no in-kernel transpose
        ctx = attention(qh, kth, vh, mask,
                        num_heads=num_heads, scale=1.0 / math.sqrt(dh))
        ctx = (ctx.reshape(b, num_heads, s, dh)
                  .transpose(0, 2, 1, 3)
                  .reshape(b * s, d))
        return linear(ctx, params["w_o"], params["b_o"], residual=residual)

    def feed_forward(h_flat, residual):
        h = linear(h_flat, params["w1"], params["b1"], activation="relu")
        return linear(h, params["w2"], params["b2"], residual=residual)

    # Dropout is identity at inference time (eval mode) — no dropout kernel.
    if use_residual:
        h1 = layernorm(xf, params["ln1_g"], params["ln1_b"])
        x1 = self_attn(h1, residual=xf)
        h2 = layernorm(x1, params["ln2_g"], params["ln2_b"])
        out = feed_forward(h2, residual=x1)
    else:
        x1 = self_attn(xf, residual=None)
        out = feed_forward(x1, residual=None)
    return out.reshape(b, s, d)


# --------------------------------------------------------------------------- #
# Pure-JAX reference                                                          #
# --------------------------------------------------------------------------- #
def _ref_layernorm(x, g, bta, eps=_LN_EPS):
    mu = jnp.mean(x, axis=-1, keepdims=True)
    xc = x - mu
    var = jnp.mean(xc * xc, axis=-1, keepdims=True)
    return xc * jax.lax.rsqrt(var + eps) * g + bta


def encoder_layer_ref(x, mask, p, *, num_heads, use_residual=True):
    b, s, d = x.shape
    dh = d // num_heads
    scale = 1.0 / math.sqrt(dh)

    def mha(xn):
        qkv = jnp.dot(xn, p["w_qkv"], precision="highest") + p["b_qkv"]
        q, k, v = jnp.split(qkv, 3, axis=-1)

        def split_heads(t):
            return t.reshape(b, s, num_heads, dh).transpose(0, 2, 1, 3)

        q, k, v = map(split_heads, (q, k, v))
        sc = jnp.einsum("bhqd,bhkd->bhqk", q, k, precision="highest") * scale
        sc = jnp.where(mask[:, None, :, :] != 0, sc, _MASK_FILL)
        pr = jax.nn.softmax(sc, axis=-1)
        ctx = jnp.einsum("bhqk,bhkd->bhqd", pr, v, precision="highest")
        ctx = ctx.transpose(0, 2, 1, 3).reshape(b, s, d)
        return jnp.dot(ctx, p["w_o"], precision="highest") + p["b_o"]

    def ffn(xn):
        h = jnp.maximum(jnp.dot(xn, p["w1"], precision="highest") + p["b1"], 0.0)
        return jnp.dot(h, p["w2"], precision="highest") + p["b2"]

    if use_residual:
        x1 = x + mha(_ref_layernorm(x, p["ln1_g"], p["ln1_b"]))
        return x1 + ffn(_ref_layernorm(x1, p["ln2_g"], p["ln2_b"]))
    return ffn(mha(x))


# --------------------------------------------------------------------------- #
if __name__ == "__main__":
    key = jax.random.PRNGKey(0)
    B, S, D, H, DFF = 2, 8, 32, 4, 64

    keys = jax.random.split(key, 13)
    x = jax.random.normal(keys[0], (B, S, D), dtype=jnp.float32)

    def w_init(k, shape, fan_in):
        return jax.random.normal(k, shape, dtype=jnp.float32) / math.sqrt(fan_in)

    params = dict(
        ln1_g=jnp.ones((D,), jnp.float32) + 0.1 * jax.random.normal(keys[1], (D,)),
        ln1_b=0.1 * jax.random.normal(keys[2], (D,)),
        w_qkv=w_init(keys[3], (D, 3 * D), D),
        b_qkv=0.1 * jax.random.normal(keys[4], (3 * D,)),
        w_o=w_init(keys[5], (D, D), D),
        b_o=0.1 * jax.random.normal(keys[6], (D,)),
        ln2_g=jnp.ones((D,), jnp.float32) + 0.1 * jax.random.normal(keys[7], (D,)),
        ln2_b=0.1 * jax.random.normal(keys[8], (D,)),
        w1=w_init(keys[9], (D, DFF), D),
        b1=0.1 * jax.random.normal(keys[10], (DFF,)),
        w2=w_init(keys[11], (DFF, D), DFF),
        b2=0.1 * jax.random.normal(keys[12], (D,)),
    )

    # Padding-style attention mask: batch 0 attends to all 8 keys, batch 1 to 6.
    lens = jnp.array([8, 6])
    mask = (jnp.arange(S)[None, None, :] < lens[:, None, None]).astype(jnp.float32)
    mask = jnp.broadcast_to(mask, (B, S, S))

    for use_res in (True, False):
        out = encoder_layer(x, mask, params, num_heads=H, use_residual=use_res)
        out = jax.block_until_ready(out)
        ref = encoder_layer_ref(x, mask, params, num_heads=H, use_residual=use_res)
        assert out.shape == x.shape
        assert jnp.allclose(out, ref, atol=1e-3, rtol=1e-3), \
            f"mismatch vs reference (use_residual={use_res})"

    print("KERNEL_OK")
</pallas_src>

<mosaic_0001>
module attributes {stable_mosaic.version = 11 : i64} {
  func.func @_layernorm_kernel(%arg0: i32, %arg1: memref<16x32xf32, #tpu.memory_space<vmem>>, %arg2: memref<1x32xf32, #tpu.memory_space<vmem>>, %arg3: memref<1x32xf32, #tpu.memory_space<vmem>>, %arg4: memref<16x32xf32, #tpu.memory_space<vmem>>) attributes {dimension_semantics = [#tpu.dimension_semantics<parallel>], iteration_bounds = array<i64: 1>, scalar_prefetch = 0 : i64, scratch_operands = 0 : i64, tpu.core_type = #tpu.core_type<tc>, window_params = [{transform_indices = @transform_0, window_bounds = array<i64: 16, 32>}, {pipeline_mode = #tpu.pipeline_mode<synchronous>, transform_indices = @transform_1, window_bounds = array<i64: 1, 32>}, {pipeline_mode = #tpu.pipeline_mode<synchronous>, transform_indices = @transform_2, window_bounds = array<i64: 1, 32>}, {transform_indices = @transform_3, window_bounds = array<i64: 16, 32>}]} {
    %c0 = arith.constant 0 : index
    %c0_0 = arith.constant 0 : index
    %0 = vector.load %arg1[%c0, %c0_0] : memref<16x32xf32, #tpu.memory_space<vmem>>, vector<16x32xf32>
    %cst = arith.constant dense<0.000000e+00> : vector<16xf32>
    %1 = vector.multi_reduction <add>, %0, %cst [1] : vector<16x32xf32> to vector<16xf32>
    %2 = vector.shape_cast %1 : vector<16xf32> to vector<16x1xf32>
    %cst_1 = arith.constant 3.200000e+01 : f32
    %3 = vector.broadcast %cst_1 : f32 to vector<16x1xf32>
    %4 = arith.divf %2, %3 : vector<16x1xf32>
    %5 = vector.broadcast %4 : vector<16x1xf32> to vector<16x32xf32>
    %6 = arith.subf %0, %5 : vector<16x32xf32>
    %7 = arith.mulf %6, %6 : vector<16x32xf32>
    %cst_2 = arith.constant dense<0.000000e+00> : vector<16xf32>
    %8 = vector.multi_reduction <add>, %7, %cst_2 [1] : vector<16x32xf32> to vector<16xf32>
    %9 = vector.shape_cast %8 : vector<16xf32> to vector<16x1xf32>
    %cst_3 = arith.constant 3.200000e+01 : f32
    %10 = vector.broadcast %cst_3 : f32 to vector<16x1xf32>
    %11 = arith.divf %9, %10 : vector<16x1xf32>
    %cst_4 = arith.constant 9.99999974E-6 : f32
    %12 = vector.broadcast %cst_4 : f32 to vector<16x1xf32>
    %13 = arith.addf %11, %12 : vector<16x1xf32>
    %14 = math.rsqrt %13 : vector<16x1xf32>
    %15 = vector.broadcast %14 : vector<16x1xf32> to vector<16x32xf32>
    %16 = arith.mulf %6, %15 : vector<16x32xf32>
    %c0_5 = arith.constant 0 : index
    %c0_6 = arith.constant 0 : index
    %17 = vector.load %arg2[%c0_5, %c0_6] : memref<1x32xf32, #tpu.memory_space<vmem>>, vector<1x32xf32>
    %18 = vector.broadcast %17 : vector<1x32xf32> to vector<16x32xf32>
    %19 = arith.mulf %16, %18 : vector<16x32xf32>
    %c0_7 = arith.constant 0 : index
    %c0_8 = arith.constant 0 : index
    %20 = vector.load %arg3[%c0_7, %c0_8] : memref<1x32xf32, #tpu.memory_space<vmem>>, vector<1x32xf32>
    %21 = vector.broadcast %20 : vector<1x32xf32> to vector<16x32xf32>
    %22 = arith.addf %19, %21 : vector<16x32xf32>
    %c0_9 = arith.constant 0 : index
    %c0_10 = arith.constant 0 : index
    %23 = vector.load %arg4[%c0_9, %c0_10] : memref<16x32xf32, #tpu.memory_space<vmem>>, vector<16x32xf32>
    tpu.vector_store %arg4[%c0_9, %c0_10], %22 {strides = array<i32>} : memref<16x32xf32, #tpu.memory_space<vmem>>, vector<16x32xf32>,
    return
  }
  func.func @transform_0(%arg0: i32) -> (i32, i32) {
    %c0_i32 = arith.constant 0 : i32
    %c0_i32_0 = arith.constant 0 : i32
    return %arg0, %c0_i32 : i32, i32
  }
  func.func @transform_1(%arg0: i32) -> (i32, i32) {
    %c0_i32 = arith.constant 0 : i32
    %c0_i32_0 = arith.constant 0 : i32
    %c0_i32_1 = arith.constant 0 : i32
    return %c0_i32, %c0_i32_0 : i32, i32
  }
  func.func @transform_2(%arg0: i32) -> (i32, i32) {
    %c0_i32 = arith.constant 0 : i32
    %c0_i32_0 = arith.constant 0 : i32
    %c0_i32_1 = arith.constant 0 : i32
    return %c0_i32, %c0_i32_0 : i32, i32
  }
  func.func @transform_3(%arg0: i32) -> (i32, i32) {
    %c0_i32 = arith.constant 0 : i32
    %c0_i32_0 = arith.constant 0 : i32
    return %arg0, %c0_i32 : i32, i32
  }
}

</mosaic_0001>

<llo_original>
// kernel: tpu_custom_call.1
$region0: #{tpu_custom_call.1}
  #allocation0 [shape = 'u32[]', space=smem, size = 0x4, offset = 0x4, fixed_abs, tag = 'smem constant byte address 0x4 - core index']
  #allocation1 [shape = 'u32[144,128]{1,0:T(1,128)}', space=vmem, size = 0x12000, scoped, tag = 'internal scratch']
  %s0 = inlined_call_operand.hbm [shape: f32[16,32], index: 0, kind: input, shape index: {}]
  %s1 = inlined_call_operand.vmem [shape: f32[1,32], index: 1, kind: input, shape index: {}]
  %s2 = inlined_call_operand.vmem [shape: f32[1,32], index: 2, kind: input, shape index: {}]
  %s3 = inlined_call_operand.hbm [shape: f32[16,32], index: 3, kind: output, shape index: {}]
  %s4 = sld [smem:[#allocation0]]
  $region26: #{tpu_custom_call.1} parent=0
    _
  %s6 = ssub.s32 1, %s4
  %s7 = scalar_select 0, %s6, %s4
  $region1: #{tpu_custom_call.1} parent=0
    #allocation2 [shape = 'u8[8192]{0}', space=vmem, size = 0x2000, scoped, tag = 'input window, operand 0, single buffered']
    #allocation3 [shape = 's32[1]{0}', space=sflag, size = 0x4, scoped, tag = 'scoped memory for tpu_custom_call.1']
    #allocation4 [shape = 's32[1]{0}', space=sflag, size = 0x4, scoped, tag = 'scoped memory for tpu_custom_call.1']
    #allocation5 [shape = 'u8[8192]{0}', space=vmem, size = 0x2000, scoped, tag = 'output window, operand 0, single buffered']
    %8 = vsyncpa [#allocation3], 0
    %9 = vsyncpa [#allocation4], 0
    // Predicated region
    $region2: #{tpu_custom_call.1} parent=1 // pred_check
      _
    $region3: #{tpu_custom_call.1} parent=1 // pred_check_branch
      %11 = sbr.rel (0) target = $region5
    $region4: #{tpu_custom_call.1} parent=1 // pred_region
      %s13 = ssub.s32 256, 256
      %14 = vsyncadd [#allocation3], %s13
      %s15 = sshll.u32 [#allocation2], 4
      %s16 = int_to_ptr.vmem [resolvable:$true] %s15
      %21 = dma.hbm_to_vmem [thread:$0]  %s0, 256, %s16, [#allocation3], 128, 128, 8
    $region5: #{tpu_custom_call.1} parent=1 // pred_fallthru
      _
    // Predicated region
    $region6: #{tpu_custom_call.1} parent=1 // pred_check
      _
    $region7: #{tpu_custom_call.1} parent=1 // pred_check_branch
      %23 = sbr.rel (0) target = $region9
    $region8: #{tpu_custom_call.1} parent=1 // pred_region
      _
    $region9: #{tpu_custom_call.1} parent=1 // pred_fallthru
      _
    // Predicated region
    $region10: #{tpu_custom_call.1} parent=1 // pred_check
      _
    $region11: #{tpu_custom_call.1} parent=1 // pred_check_branch
      %25 = sbr.rel (0) target = $region13
    $region12: #{tpu_custom_call.1} parent=1 // pred_region
      _
    $region13: #{tpu_custom_call.1} parent=1 // pred_fallthru
      _
    // Predicated region
    $region14: #{tpu_custom_call.1} parent=1 // pred_check
      _
    $region15: #{tpu_custom_call.1} parent=1 // pred_check_branch
      %27 = sbr.rel (0) target = $region17
    $region16: #{tpu_custom_call.1} parent=1 // pred_region
      %28 = dma.done [#allocation3], 256
    $region17: #{tpu_custom_call.1} parent=1 // pred_fallthru
      _
    %v29 = vld [vmem:[#allocation2] sm:$0xff]
    %v30 = vld [vmem:[#allocation2 + $0x8] sm:$0xff]
    %vm31 = vcmask 261120
    %v32 = vsel %vm31, %v29, 0.0
    %33 = vadd.xlane.f32.xlu0 %v32
    %v34 = vpop.xlane.xlu0 %33
    %v35 = vsel %vm31, %v30, 0.0
    %36 = vadd.xlane.f32.xlu0 %v35
    %v37 = vpop.xlane.xlu0 %36
    %v38 = vrcp.pop 32.0
    %v39 = vmul.f32 %v34, %v38
    %v40 = vmul.f32 %v37, %v38
    %v41 = vsub.f32 %v29, %v39
    %v42 = vsub.f32 %v30, %v40
    %v43 = vmul.f32 %v41, %v41
    %v44 = vmul.f32 %v42, %v42
    %v45 = vsel %vm31, %v43, 0.0
    %46 = vadd.xlane.f32.xlu0 %v45
    %v47 = vpop.xlane.xlu0 %46
    %v48 = vsel %vm31, %v44, 0.0
    %49 = vadd.xlane.f32.xlu0 %v48
    %v50 = vpop.xlane.xlu0 %49
    %v51 = vmul.f32 %v47, %v38
    %v52 = vmul.f32 %v50, %v38
    %v53 = vadd.f32 %v51, 1e-05
    %v54 = vadd.f32 %v52, 1e-05
    %v55 = vrsqrt.pop %v53
    %v56 = vrsqrt.pop %v54
    %v57 = vmul.f32 %v41, %v55
    %v58 = vmul.f32 %v42, %v56
    %v59 = vld [vmem:[%s1] sm:$0x1]
    %v61 = vlaneseq
    %v62 = vshrl.u32 %v61, 7
    %v63 = vsub.s32 0, %v62
    %v64 = vrot.slane %v59, %v63
    %v66 = vmul.f32 %v57, %v64
    %v67 = vmul.f32 %v58, %v64
    %v68 = vld [vmem:[%s2] sm:$0x1]
    %v70 = vlaneseq
    %v71 = vshrl.u32 %v70, 7
    %v72 = vsub.s32 0, %v71
    %v73 = vrot.slane %v68, %v72
    %v75 = vadd.f32 %v66, %v73
    %v76 = vadd.f32 %v67, %v73
    %77 = vst.msk [vmem:[#allocation5] sm:$0xff] %vm31, %v75
    %78 = vst.msk [vmem:[#allocation5 + $0x8] sm:$0xff] %vm31, %v76
    // Predicated region
    $region18: #{tpu_custom_call.1} parent=1 // pred_check
      _
    $region19: #{tpu_custom_call.1} parent=1 // pred_check_branch
      %80 = sbr.rel (0) target = $region21
    $region20: #{tpu_custom_call.1} parent=1 // pred_region
      %s82 = ssub.s32 256, 256
      %83 = vsyncadd [#allocation4], %s82
      %s84 = sshll.u32 [#allocation5], 4
      %s85 = int_to_ptr.vmem [resolvable:$true] %s84
      %90 = dma.vmem_to_hbm [thread:$0]  %s85, 256, %s3, [#allocation4], 128, 128, 8
    $region21: #{tpu_custom_call.1} parent=1 // pred_fallthru
      _
    // Predicated region
    $region22: #{tpu_custom_call.1} parent=1 // pred_check
      _
    $region23: #{tpu_custom_call.1} parent=1 // pred_check_branch
      %92 = sbr.rel (0) target = $region25
    $region24: #{tpu_custom_call.1} parent=1 // pred_region
      %93 = dma.done [#allocation4], 256
    $region25: #{tpu_custom_call.1} parent=1 // pred_fallthru
      _
    %94 = vsyncpa [#allocation3], 1
    %95 = vsyncpa [#allocation4], 1

</llo_original>
